<compile_context>
chip_gen: v6e
topology: v6e:2x2x1
jax: 0.10.0
libtpu: 0.0.40
codegen_flags: <defaults>
</compile_context>

<pallas_src>
import functools

import jax
import jax.numpy as jnp
from jax.experimental import pallas as pl
from jax.experimental.pallas import tpu as pltpu

D_MODEL = 384  # embedding dim produced by model.encode, fixed by nn.Linear(384, 1)


def _round_up(x, m):
    return ((x + m - 1) // m) * m


def _default_tm():
    """Generation-aware row-tile default (double-buffered tile must fit scoped VMEM)."""
    try:
        kind = jax.devices()[0].device_kind.lower()
    except Exception:  # pragma: no cover - defensive
        kind = ""
    if "v6" in kind or "v7" in kind or "7x" in kind:
        # v6e / v7x: 32 MiB default scoped VMEM -> 2 x 12 MiB f32 buffers fit.
        return 8192
    # v5e and unknown parts: stay within the 16 MiB default scoped VMEM (2 x 6 MiB).
    return 4096


def bc_head_kernel(x_ref, w_ref, b_ref, o_ref):
    # x_ref: (tm, 384) VMEM tile of encoded rows (rows -> sublanes, 384 = 3*128 lanes),
    #        streamed in its native dtype (f32 or bf16) and upcast on the VPU here.
    # w_ref: (1, 384)  lane-dense f32 weight row (broadcast over sublanes on the VPU)
    # b_ref: (1, 1)    scalar bias in SMEM
    # o_ref: (1, tm)   lane-dense f32 output row (one lane per input row)
    x = x_ref[...].astype(jnp.float32)
    prod = x * w_ref[...]                                   # VPU elementwise, f32
    # Pre-sum the three 128-lane chunks on the VPU before the XLU lane reduce.
    p = prod[:, 0:128] + prod[:, 128:256] + prod[:, 256:384]
    row = jnp.sum(p, axis=-1)                               # XLU lane reduce -> (tm,)
    o_ref[...] = (row + b_ref[0, 0]).reshape(1, -1)


@functools.partial(jax.jit, static_argnames=("tm",))
def stage2_head(encoded, weight, bias, *, tm=None):
    """Pallas version of nn.Linear(384, 1) applied to encoded embeddings.

    encoded: (N, 384), f32 or bf16 (streamed in native dtype)
    weight:  PyTorch layout (1, 384) (also accepts (384, 1) or (384,))
    bias:    (1,) / () / (1, 1)
    returns: (N, 1) float32
    """
    N, D = encoded.shape
    assert D == D_MODEL

    if tm is None:
        tm = _default_tm()

    w_row = jnp.asarray(weight, jnp.float32).reshape(1, D_MODEL)
    b = jnp.asarray(bias, jnp.float32).reshape(1, 1)

    # Row tile: multiple of 128 (lane-dense output blocks), capped at `tm` and at
    # what N actually needs.
    tm_eff = min(int(tm), _round_up(N, 128))
    tm_eff = max(128, (tm_eff // 128) * 128)
    # Keep >= 2 grid steps for large N so both v7x TensorCores get work
    # (no-op extra ~0.35us step on single-TC v5e/v6e).
    if N > 256:
        tm_eff = min(tm_eff, _round_up((N + 1) // 2, 128))

    num_tiles = pl.cdiv(N, tm_eff)
    n_out = num_tiles * tm_eff  # lane-dense output slab; tail (>= N) sliced off below

    x_bytes = jnp.dtype(encoded.dtype).itemsize
    cost = pl.CostEstimate(
        flops=2 * N * D_MODEL,
        transcendentals=0,
        bytes_accessed=N * D_MODEL * x_bytes + D_MODEL * 4 + N * 4,
    )

    out_row = pl.pallas_call(
        bc_head_kernel,
        out_shape=jax.ShapeDtypeStruct((1, n_out), jnp.float32),
        grid_spec=pltpu.PrefetchScalarGridSpec(
            num_scalar_prefetch=0,
            grid=(num_tiles,),
            in_specs=[
                # Last block may be partial; garbage rows only feed output lanes >= N,
                # which are discarded by the [:N] slice in the wrapper.
                pl.BlockSpec((tm_eff, D_MODEL), lambda i: (i, 0)),
                pl.BlockSpec((1, D_MODEL), lambda i: (0, 0)),
                pl.BlockSpec(memory_space=pltpu.MemorySpace.SMEM),
            ],
            out_specs=pl.BlockSpec((1, tm_eff), lambda i: (0, i)),
        ),
        compiler_params=pltpu.CompilerParams(
            dimension_semantics=("parallel",),
        ),
        cost_estimate=cost,
    )(encoded, w_row, b)

    return out_row.reshape(n_out, 1)[:N]


def stage2_forward(encoded, weight, bias):
    # TODO(synk): self.model.encode(x) is an external sentence-transformer with no
    # clean Pallas equivalent here; the kernel consumes pre-encoded (N, 384)
    # embeddings and implements the nn.Linear(384, 1) head.
    return stage2_head(encoded, weight, bias)


if __name__ == "__main__":
    key = jax.random.PRNGKey(0)
    k_x, k_w = jax.random.split(key)

    # Small batch of "sentences" standing in for model.encode(x) output.
    N = 8
    encoded = jax.random.normal(k_x, (N, D_MODEL), dtype=jnp.float32)

    # nn.Linear(384, 1) parameters, initialized like init_weights:
    #   weight ~ Normal(0, initializer_range), bias = 0   (PyTorch (1, 384) layout)
    initializer_range = 0.02
    weight = jax.random.normal(k_w, (1, D_MODEL), dtype=jnp.float32) * initializer_range
    bias = jnp.zeros((1,), dtype=jnp.float32)

    out = stage2_forward(encoded, weight, bias)
    out = jax.block_until_ready(out)

    # Full-precision f32 reference (avoids TPU default bf16 matmul precision).
    ref = jnp.sum(encoded * weight.reshape(1, D_MODEL), axis=-1, keepdims=True) + bias[0]
    assert out.shape == (N, 1)
    assert jnp.allclose(out, ref, atol=1e-4, rtol=1e-4)

    # Multi-tile + partial-edge-block path (N not a multiple of the tile, no padding).
    N2 = 300
    k_x2, k_x3 = jax.random.split(k_x)
    enc2 = jax.random.normal(k_x2, (N2, D_MODEL), dtype=jnp.float32)
    out2 = stage2_head(enc2, weight, bias, tm=128)
    out2 = jax.block_until_ready(out2)
    ref2 = jnp.sum(enc2 * weight.reshape(1, D_MODEL), axis=-1, keepdims=True) + bias[0]
    assert out2.shape == (N2, 1)
    assert jnp.allclose(out2, ref2, atol=1e-4, rtol=1e-4)

    # Native-dtype (bf16) streaming path with in-kernel upcast.
    N3 = 1000
    enc3 = jax.random.normal(k_x3, (N3, D_MODEL), dtype=jnp.float32).astype(jnp.bfloat16)
    out3 = stage2_head(enc3, weight, bias)
    out3 = jax.block_until_ready(out3)
    ref3 = (
        jnp.sum(enc3.astype(jnp.float32) * weight.reshape(1, D_MODEL), axis=-1, keepdims=True)
        + bias[0]
    )
    assert out3.shape == (N3, 1)
    assert jnp.allclose(out3, ref3, atol=1e-3, rtol=1e-3)

    print("KERNEL_OK")
</pallas_src>

<mosaic_0001>
module attributes {stable_mosaic.version = 11 : i64} {
  func.func @bc_head_kernel(%arg0: i32, %arg1: memref<128x384xf32, #tpu.memory_space<vmem>>, %arg2: memref<1x384xf32, #tpu.memory_space<vmem>>, %arg3: memref<1x1xf32, #tpu.memory_space<smem>>, %arg4: memref<1x128xf32, #tpu.memory_space<vmem>>) attributes {dimension_semantics = [#tpu.dimension_semantics<parallel>], iteration_bounds = array<i64: 1>, scalar_prefetch = 0 : i64, scratch_operands = 0 : i64, tpu.core_type = #tpu.core_type<tc>, window_params = [{transform_indices = @transform_0, window_bounds = array<i64: 128, 384>}, {pipeline_mode = #tpu.pipeline_mode<synchronous>, transform_indices = @transform_1, window_bounds = array<i64: 1, 384>}, {transform_indices = @transform_2, window_bounds = array<i64: 1, 1>}, {transform_indices = @transform_3, window_bounds = array<i64: 1, 128>}]} {
    %c0 = arith.constant 0 : index
    %c0_0 = arith.constant 0 : index
    %0 = vector.load %arg1[%c0, %c0_0] : memref<128x384xf32, #tpu.memory_space<vmem>>, vector<128x384xf32>
    %c0_1 = arith.constant 0 : index
    %c0_2 = arith.constant 0 : index
    %1 = vector.load %arg2[%c0_1, %c0_2] : memref<1x384xf32, #tpu.memory_space<vmem>>, vector<1x384xf32>
    %2 = vector.broadcast %1 : vector<1x384xf32> to vector<128x384xf32>
    %3 = arith.mulf %0, %2 : vector<128x384xf32>
    %4 = vector.extract_strided_slice %3 {offsets = [0, 0], sizes = [128, 128], strides = [1, 1]} : vector<128x384xf32> to vector<128x128xf32>
    %5 = vector.extract_strided_slice %3 {offsets = [0, 128], sizes = [128, 128], strides = [1, 1]} : vector<128x384xf32> to vector<128x128xf32>
    %6 = arith.addf %4, %5 : vector<128x128xf32>
    %7 = vector.extract_strided_slice %3 {offsets = [0, 256], sizes = [128, 128], strides = [1, 1]} : vector<128x384xf32> to vector<128x128xf32>
    %8 = arith.addf %6, %7 : vector<128x128xf32>
    %cst = arith.constant dense<0.000000e+00> : vector<128xf32>
    %9 = vector.multi_reduction <add>, %8, %cst [1] : vector<128x128xf32> to vector<128xf32>
    %c0_3 = arith.constant 0 : index
    %c0_4 = arith.constant 0 : index
    %10 = memref.load %arg3[%c0_3, %c0_4] : memref<1x1xf32, #tpu.memory_space<smem>>
    %11 = vector.broadcast %10 : f32 to vector<128xf32>
    %12 = arith.addf %9, %11 : vector<128xf32>
    %13 = vector.shape_cast %12 : vector<128xf32> to vector<1x128xf32>
    %c0_5 = arith.constant 0 : index
    %c0_6 = arith.constant 0 : index
    %14 = vector.load %arg4[%c0_5, %c0_6] : memref<1x128xf32, #tpu.memory_space<vmem>>, vector<1x128xf32>
    tpu.vector_store %arg4[%c0_5, %c0_6], %13 {strides = array<i32>} : memref<1x128xf32, #tpu.memory_space<vmem>>, vector<1x128xf32>,
    return
  }
  func.func @transform_0(%arg0: i32) -> (i32, i32) {
    %c0_i32 = arith.constant 0 : i32
    %c0_i32_0 = arith.constant 0 : i32
    return %arg0, %c0_i32 : i32, i32
  }
  func.func @transform_1(%arg0: i32) -> (i32, i32) {
    %c0_i32 = arith.constant 0 : i32
    %c0_i32_0 = arith.constant 0 : i32
    %c0_i32_1 = arith.constant 0 : i32
    return %c0_i32, %c0_i32_0 : i32, i32
  }
  func.func @transform_2(%arg0: i32) -> (i32, i32) {
    %c0_i32 = arith.constant 0 : i32
    %c0_i32_0 = arith.constant 0 : i32
    %c0_i32_1 = arith.constant 0 : i32
    return %c0_i32, %c0_i32_0 : i32, i32
  }
  func.func @transform_3(%arg0: i32) -> (i32, i32) {
    %c0_i32 = arith.constant 0 : i32
    %c0_i32_0 = arith.constant 0 : i32
    return %c0_i32, %arg0 : i32, i32
  }
}

</mosaic_0001>

<llo_original>
// kernel: stage2_head.1
$region0: #{stage2_head.1}
  #allocation0 [shape = 'u32[]', space=smem, size = 0x4, offset = 0x4, fixed_abs, tag = 'smem constant byte address 0x4 - core index']
  #allocation1 [shape = 'u32[144,128]{1,0:T(1,128)}', space=vmem, size = 0x12000, scoped, tag = 'internal scratch']
  #allocation2 [shape = 'f32[1,1]{1,0:T(1,128)S(6)}', space=smem, size = 0x200, scoped, tag = 'scoped memory for stage2_head.1']
  %s0 = inlined_call_operand.hbm [shape: f32[8,384], index: 0, kind: input, shape index: {}]
  %s1 = inlined_call_operand.vmem [shape: f32[1,384], index: 1, kind: input, shape index: {}]
  %s2 = inlined_call_operand.<no memory space> [shape: f32[1,1], index: 2, kind: input, shape index: {}]
  %s3 = inlined_call_operand.vmem [shape: f32[1,128], index: 3, kind: output, shape index: {}]
  %s4 = sld [smem:[#allocation0]]
  $region26: #{stage2_head.1} parent=0
    _
  %s6 = ssub.s32 1, %s4
  %s7 = scalar_select 0, %s6, %s4
  %8 = sst [smem:[#allocation2]] %s2
  $region1: #{stage2_head.1} parent=0
    #allocation3 [shape = 'u8[196608]{0}', space=vmem, size = 0x30000, scoped, tag = 'input window, operand 0, single buffered']
    #allocation4 [shape = 's32[1]{0}', space=sflag, size = 0x4, scoped, tag = 'scoped memory for stage2_head.1']
    %9 = vsyncpa [#allocation4], 0
    // Predicated region
    $region2: #{stage2_head.1} parent=1 // pred_check
      _
    $region3: #{stage2_head.1} parent=1 // pred_check_branch
      %11 = sbr.rel (0) target = $region5
    $region4: #{stage2_head.1} parent=1 // pred_region
      %s13 = ssub.s32 6144, 384
      %14 = vsyncadd [#allocation4], %s13
      %s15 = sshll.u32 [#allocation3], 4
      %s16 = int_to_ptr.vmem [resolvable:$true] %s15
      %21 = dma.hbm_to_vmem [thread:$0]  %s0, 384, %s16, [#allocation4], 384, 384, 24
    $region5: #{stage2_head.1} parent=1 // pred_fallthru
      _
    // Predicated region
    $region6: #{stage2_head.1} parent=1 // pred_check
      _
    $region7: #{stage2_head.1} parent=1 // pred_check_branch
      %23 = sbr.rel (0) target = $region9
    $region8: #{stage2_head.1} parent=1 // pred_region
      _
    $region9: #{stage2_head.1} parent=1 // pred_fallthru
      _
    // Predicated region
    $region10: #{stage2_head.1} parent=1 // pred_check
      _
    $region11: #{stage2_head.1} parent=1 // pred_check_branch
      %25 = sbr.rel (0) target = $region13
    $region12: #{stage2_head.1} parent=1 // pred_region
      _
    $region13: #{stage2_head.1} parent=1 // pred_fallthru
      _
    // Predicated region
    $region14: #{stage2_head.1} parent=1 // pred_check
      _
    $region15: #{stage2_head.1} parent=1 // pred_check_branch
      %27 = sbr.rel (0) target = $region17
    $region16: #{stage2_head.1} parent=1 // pred_region
      %28 = dma.done [#allocation4], 6144
    $region17: #{stage2_head.1} parent=1 // pred_fallthru
      _
    %v29 = vld [vmem:[#allocation3] sm:$0xff]
    %v30 = vld [vmem:[#allocation3 + $0x8] sm:$0xff]
    %v31 = vld [vmem:[#allocation3 + $0x10] sm:$0xff]
    %v32 = vld [vmem:[#allocation3 + $0x18] sm:$0xff]
    %v33 = vld [vmem:[#allocation3 + $0x20] sm:$0xff]
    %v34 = vld [vmem:[#allocation3 + $0x28] sm:$0xff]
    %v35 = vld [vmem:[#allocation3 + $0x30] sm:$0xff]
    %v36 = vld [vmem:[#allocation3 + $0x38] sm:$0xff]
    %v37 = vld [vmem:[#allocation3 + $0x40] sm:$0xff]
    %v38 = vld [vmem:[#allocation3 + $0x48] sm:$0xff]
    %v39 = vld [vmem:[#allocation3 + $0x50] sm:$0xff]
    %v40 = vld [vmem:[#allocation3 + $0x58] sm:$0xff]
    %v41 = vld [vmem:[#allocation3 + $0x60] sm:$0xff]
    %v42 = vld [vmem:[#allocation3 + $0x68] sm:$0xff]
    %v43 = vld [vmem:[#allocation3 + $0x70] sm:$0xff]
    %v44 = vld [vmem:[#allocation3 + $0x78] sm:$0xff]
    %v45 = vld [vmem:[#allocation3 + $0x80] sm:$0xff]
    %v46 = vld [vmem:[#allocation3 + $0x88] sm:$0xff]
    %v47 = vld [vmem:[#allocation3 + $0x90] sm:$0xff]
    %v48 = vld [vmem:[#allocation3 + $0x98] sm:$0xff]
    %v49 = vld [vmem:[#allocation3 + $0xa0] sm:$0xff]
    %v50 = vld [vmem:[#allocation3 + $0xa8] sm:$0xff]
    %v51 = vld [vmem:[#allocation3 + $0xb0] sm:$0xff]
    %v52 = vld [vmem:[#allocation3 + $0xb8] sm:$0xff]
    %v53 = vld [vmem:[#allocation3 + $0xc0] sm:$0xff]
    %v54 = vld [vmem:[#allocation3 + $0xc8] sm:$0xff]
    %v55 = vld [vmem:[#allocation3 + $0xd0] sm:$0xff]
    %v56 = vld [vmem:[#allocation3 + $0xd8] sm:$0xff]
    %v57 = vld [vmem:[#allocation3 + $0xe0] sm:$0xff]
    %v58 = vld [vmem:[#allocation3 + $0xe8] sm:$0xff]
    %v59 = vld [vmem:[#allocation3 + $0xf0] sm:$0xff]
    %v60 = vld [vmem:[#allocation3 + $0xf8] sm:$0xff]
    %v61 = vld [vmem:[#allocation3 + $0x100] sm:$0xff]
    %v62 = vld [vmem:[#allocation3 + $0x108] sm:$0xff]
    %v63 = vld [vmem:[#allocation3 + $0x110] sm:$0xff]
    %v64 = vld [vmem:[#allocation3 + $0x118] sm:$0xff]
    %v65 = vld [vmem:[#allocation3 + $0x120] sm:$0xff]
    %v66 = vld [vmem:[#allocation3 + $0x128] sm:$0xff]
    %v67 = vld [vmem:[#allocation3 + $0x130] sm:$0xff]
    %v68 = vld [vmem:[#allocation3 + $0x138] sm:$0xff]
    %v69 = vld [vmem:[#allocation3 + $0x140] sm:$0xff]
    %v70 = vld [vmem:[#allocation3 + $0x148] sm:$0xff]
    %v71 = vld [vmem:[#allocation3 + $0x150] sm:$0xff]
    %v72 = vld [vmem:[#allocation3 + $0x158] sm:$0xff]
    %v73 = vld [vmem:[#allocation3 + $0x160] sm:$0xff]
    %v74 = vld [vmem:[#allocation3 + $0x168] sm:$0xff]
    %v75 = vld [vmem:[#allocation3 + $0x170] sm:$0xff]
    %v76 = vld [vmem:[#allocation3 + $0x178] sm:$0xff]
    %v77 = vld [vmem:[%s1] sm:$0x7]
    %v79 = vlaneseq
    %v80 = vshrl.u32 %v79, 7
    %v81 = vsub.s32 0, %v80
    %v82 = vrot.slane %v77, %v81
    %v83 = vlaneseq
    %v84 = vshrl.u32 %v83, 7
    %v85 = vsub.s32 1, %v84
    %v86 = vrot.slane %v77, %v85
    %v87 = vlaneseq
    %v88 = vshrl.u32 %v87, 7
    %v89 = vsub.s32 2, %v88
    %v90 = vrot.slane %v77, %v89
    %v94 = vmul.f32 %v29, %v82
    %v95 = vmul.f32 %v30, %v86
    %v96 = vmul.f32 %v31, %v90
    %v97 = vmul.f32 %v32, %v82
    %v98 = vmul.f32 %v33, %v86
    %v99 = vmul.f32 %v34, %v90
    %v100 = vmul.f32 %v35, %v82
    %v101 = vmul.f32 %v36, %v86
    %v102 = vmul.f32 %v37, %v90
    %v103 = vmul.f32 %v38, %v82
    %v104 = vmul.f32 %v39, %v86
    %v105 = vmul.f32 %v40, %v90
    %v106 = vmul.f32 %v41, %v82
    %v107 = vmul.f32 %v42, %v86
    %v108 = vmul.f32 %v43, %v90
    %v109 = vmul.f32 %v44, %v82
    %v110 = vmul.f32 %v45, %v86
    %v111 = vmul.f32 %v46, %v90
    %v112 = vmul.f32 %v47, %v82
    %v113 = vmul.f32 %v48, %v86
    %v114 = vmul.f32 %v49, %v90
    %v115 = vmul.f32 %v50, %v82
    %v116 = vmul.f32 %v51, %v86
    %v117 = vmul.f32 %v52, %v90
    %v118 = vmul.f32 %v53, %v82
    %v119 = vmul.f32 %v54, %v86
    %v120 = vmul.f32 %v55, %v90
    %v121 = vmul.f32 %v56, %v82
    %v122 = vmul.f32 %v57, %v86
    %v123 = vmul.f32 %v58, %v90
    %v124 = vmul.f32 %v59, %v82
    %v125 = vmul.f32 %v60, %v86
    %v126 = vmul.f32 %v61, %v90
    %v127 = vmul.f32 %v62, %v82
    %v128 = vmul.f32 %v63, %v86
    %v129 = vmul.f32 %v64, %v90
    %v130 = vmul.f32 %v65, %v82
    %v131 = vmul.f32 %v66, %v86
    %v132 = vmul.f32 %v67, %v90
    %v133 = vmul.f32 %v68, %v82
    %v134 = vmul.f32 %v69, %v86
    %v135 = vmul.f32 %v70, %v90
    %v136 = vmul.f32 %v71, %v82
    %v137 = vmul.f32 %v72, %v86
    %v138 = vmul.f32 %v73, %v90
    %v139 = vmul.f32 %v74, %v82
    %v140 = vmul.f32 %v75, %v86
    %v141 = vmul.f32 %v76, %v90
    %v142 = vadd.f32 %v94, %v95
    %v143 = vadd.f32 %v97, %v98
    %v144 = vadd.f32 %v100, %v101
    %v145 = vadd.f32 %v103, %v104
    %v146 = vadd.f32 %v106, %v107
    %v147 = vadd.f32 %v109, %v110
    %v148 = vadd.f32 %v112, %v113
    %v149 = vadd.f32 %v115, %v116
    %v150 = vadd.f32 %v118, %v119
    %v151 = vadd.f32 %v121, %v122
    %v152 = vadd.f32 %v124, %v125
    %v153 = vadd.f32 %v127, %v128
    %v154 = vadd.f32 %v130, %v131
    %v155 = vadd.f32 %v133, %v134
    %v156 = vadd.f32 %v136, %v137
    %v157 = vadd.f32 %v139, %v140
    %v158 = vadd.f32 %v142, %v96
    %v159 = vadd.f32 %v143, %v99
    %v160 = vadd.f32 %v144, %v102
    %v161 = vadd.f32 %v145, %v105
    %v162 = vadd.f32 %v146, %v108
    %v163 = vadd.f32 %v147, %v111
    %v164 = vadd.f32 %v148, %v114
    %v165 = vadd.f32 %v149, %v117
    %v166 = vadd.f32 %v150, %v120
    %v167 = vadd.f32 %v151, %v123
    %v168 = vadd.f32 %v152, %v126
    %v169 = vadd.f32 %v153, %v129
    %v170 = vadd.f32 %v154, %v132
    %v171 = vadd.f32 %v155, %v135
    %v172 = vadd.f32 %v156, %v138
    %v173 = vadd.f32 %v157, %v141
    %174 = vadd.xlane.f32.xlu0 %v158
    %v175 = vpop.xlane.xlu0 %174
    %176 = vadd.xlane.f32.xlu0 %v159
    %v177 = vpop.xlane.xlu0 %176
    %178 = vadd.xlane.f32.xlu0 %v160
    %v179 = vpop.xlane.xlu0 %178
    %180 = vadd.xlane.f32.xlu0 %v161
    %v181 = vpop.xlane.xlu0 %180
    %182 = vadd.xlane.f32.xlu0 %v162
    %v183 = vpop.xlane.xlu0 %182
    %184 = vadd.xlane.f32.xlu0 %v163
    %v185 = vpop.xlane.xlu0 %184
    %186 = vadd.xlane.f32.xlu0 %v164
    %v187 = vpop.xlane.xlu0 %186
    %188 = vadd.xlane.f32.xlu0 %v165
    %v189 = vpop.xlane.xlu0 %188
    %190 = vadd.xlane.f32.xlu0 %v166
    %v191 = vpop.xlane.xlu0 %190
    %192 = vadd.xlane.f32.xlu0 %v167
    %v193 = vpop.xlane.xlu0 %192
    %194 = vadd.xlane.f32.xlu0 %v168
    %v195 = vpop.xlane.xlu0 %194
    %196 = vadd.xlane.f32.xlu0 %v169
    %v197 = vpop.xlane.xlu0 %196
    %198 = vadd.xlane.f32.xlu0 %v170
    %v199 = vpop.xlane.xlu0 %198
    %200 = vadd.xlane.f32.xlu0 %v171
    %v201 = vpop.xlane.xlu0 %200
    %202 = vadd.xlane.f32.xlu0 %v172
    %v203 = vpop.xlane.xlu0 %202
    %204 = vadd.xlane.f32.xlu0 %v173
    %v205 = vpop.xlane.xlu0 %204
    %s206 = sld [smem:[#allocation2]]
    %v207 = vstv %s206
    %v208 = vadd.f32 %v175, %v207
    %v209 = vadd.f32 %v177, %v207
    %v210 = vadd.f32 %v179, %v207
    %v211 = vadd.f32 %v181, %v207
    %v212 = vadd.f32 %v183, %v207
    %v213 = vadd.f32 %v185, %v207
    %v214 = vadd.f32 %v187, %v207
    %v215 = vadd.f32 %v189, %v207
    %v216 = vadd.f32 %v191, %v207
    %v217 = vadd.f32 %v193, %v207
    %v218 = vadd.f32 %v195, %v207
    %v219 = vadd.f32 %v197, %v207
    %v220 = vadd.f32 %v199, %v207
    %v221 = vadd.f32 %v201, %v207
    %v222 = vadd.f32 %v203, %v207
    %v223 = vadd.f32 %v205, %v207
    %v240 = vlaneseq
    %v241 = vand.u32 %v240, 127
    %v242 = vlaneseq
    %v243 = vshrl.u32 %v242, 7
    %v244 = vsub.s32 %v241, %v243
    %v245 = vrot.slane %v208, %v244
    %v246 = vadd.s32 %v241, 4294967288
    %v247 = vlaneseq
    %v248 = vshrl.u32 %v247, 7
    %v249 = vsub.s32 %v246, %v248
    %v250 = vrot.slane %v209, %v249
    %vm251 = vcmask 130112
    %v252 = vsel %vm251, %v250, %v245
    %v253 = vadd.s32 %v241, 4294967280
    %v254 = vlaneseq
    %v255 = vshrl.u32 %v254, 7
    %v256 = vsub.s32 %v253, %v255
    %v257 = vrot.slane %v210, %v256
    %vm258 = vcmask 195712
    %v259 = vsel %vm258, %v257, %v252
    %v260 = vadd.s32 %v241, 4294967272
    %v261 = vlaneseq
    %v262 = vshrl.u32 %v261, 7
    %v263 = vsub.s32 %v260, %v262
    %v264 = vrot.slane %v211, %v263
    %vm265 = vcmask 261312
    %v266 = vsel %vm265, %v264, %v259
    %v267 = vadd.s32 %v241, 4294967264
    %v268 = vlaneseq
    %v269 = vshrl.u32 %v268, 7
    %v270 = vsub.s32 %v267, %v269
    %v271 = vrot.slane %v212, %v270
    %vm272 = vcmask 326912
    %v273 = vsel %vm272, %v271, %v266
    %v274 = vadd.s32 %v241, 4294967256
    %v275 = vlaneseq
    %v276 = vshrl.u32 %v275, 7
    %v277 = vsub.s32 %v274, %v276
    %v278 = vrot.slane %v213, %v277
    %vm279 = vcmask 392512
    %v280 = vsel %vm279, %v278, %v273
    %v281 = vadd.s32 %v241, 4294967248
    %v282 = vlaneseq
    %v283 = vshrl.u32 %v282, 7
    %v284 = vsub.s32 %v281, %v283
    %v285 = vrot.slane %v214, %v284
    %vm286 = vcmask 458112
    %v287 = vsel %vm286, %v285, %v280
    %v288 = vadd.s32 %v241, 4294967240
    %v289 = vlaneseq
    %v290 = vshrl.u32 %v289, 7
    %v291 = vsub.s32 %v288, %v290
    %v292 = vrot.slane %v215, %v291
    %vm293 = vcmask 523712
    %v294 = vsel %vm293, %v292, %v287
    %v295 = vadd.s32 %v241, 4294967232
    %v296 = vlaneseq
    %v297 = vshrl.u32 %v296, 7
    %v298 = vsub.s32 %v295, %v297
    %v299 = vrot.slane %v216, %v298
    %vm300 = vcmask 589312
    %v301 = vsel %vm300, %v299, %v294
    %v302 = vadd.s32 %v241, 4294967224
    %v303 = vlaneseq
    %v304 = vshrl.u32 %v303, 7
    %v305 = vsub.s32 %v302, %v304
    %v306 = vrot.slane %v217, %v305
    %vm307 = vcmask 654912
    %v308 = vsel %vm307, %v306, %v301
    %v309 = vadd.s32 %v241, 4294967216
    %v310 = vlaneseq
    %v311 = vshrl.u32 %v310, 7
    %v312 = vsub.s32 %v309, %v311
    %v313 = vrot.slane %v218, %v312
    %vm314 = vcmask 720512
    %v315 = vsel %vm314, %v313, %v308
    %v316 = vadd.s32 %v241, 4294967208
    %v317 = vlaneseq
    %v318 = vshrl.u32 %v317, 7
    %v319 = vsub.s32 %v316, %v318
    %v320 = vrot.slane %v219, %v319
    %vm321 = vcmask 786112
    %v322 = vsel %vm321, %v320, %v315
    %v323 = vadd.s32 %v241, 4294967200
    %v324 = vlaneseq
    %v325 = vshrl.u32 %v324, 7
    %v326 = vsub.s32 %v323, %v325
    %v327 = vrot.slane %v220, %v326
    %vm328 = vcmask 851712
    %v329 = vsel %vm328, %v327, %v322
    %v330 = vadd.s32 %v241, 4294967192
    %v331 = vlaneseq
    %v332 = vshrl.u32 %v331, 7
    %v333 = vsub.s32 %v330, %v332
    %v334 = vrot.slane %v221, %v333
    %vm335 = vcmask 917312
    %v336 = vsel %vm335, %v334, %v329
    %v337 = vadd.s32 %v241, 4294967184
    %v338 = vlaneseq
    %v339 = vshrl.u32 %v338, 7
    %v340 = vsub.s32 %v337, %v339
    %v341 = vrot.slane %v222, %v340
    %vm342 = vcmask 982912
    %v343 = vsel %vm342, %v341, %v336
    %v344 = vadd.s32 %v241, 4294967176
    %v345 = vlaneseq
    %v346 = vshrl.u32 %v345, 7
    %v347 = vsub.s32 %v344, %v346
    %v348 = vrot.slane %v223, %v347
    %vm349 = vcmask 1048512
    %v350 = vsel %vm349, %v348, %v343
    %352 = vst [vmem:[%s3] sm:$0x1] %v350
    // Predicated region
    $region18: #{stage2_head.1} parent=1 // pred_check
      _
    $region19: #{stage2_head.1} parent=1 // pred_check_branch
      %354 = sbr.rel (0) target = $region21
    $region20: #{stage2_head.1} parent=1 // pred_region
      _
    $region21: #{stage2_head.1} parent=1 // pred_fallthru
      _
    // Predicated region
    $region22: #{stage2_head.1} parent=1 // pred_check
      _
    $region23: #{stage2_head.1} parent=1 // pred_check_branch
      %356 = sbr.rel (0) target = $region25
    $region24: #{stage2_head.1} parent=1 // pred_region
      _
    $region25: #{stage2_head.1} parent=1 // pred_fallthru
      _
    %357 = vsyncpa [#allocation4], 1

</llo_original>
